<compile_context>
chip_gen: v6e
topology: v6e:2x2x1
jax: 0.10.0
libtpu: 0.0.40
codegen_flags: <defaults>
</compile_context>

<pallas_src>
import functools

import jax
import jax.numpy as jnp
from jax import lax
from jax.experimental import pallas as pl
from jax.experimental.pallas import tpu as pltpu


def _round_up(x: int, m: int) -> int:
    return ((x + m - 1) // m) * m


def _balanced_tile(n: int, tile_max: int, align: int) -> int:
    """Smallest aligned tile with the same tile count as tile_max (minimizes padding)."""
    n_tiles = max(1, -(-n // tile_max))
    return _round_up(max(-(-n // n_tiles), align), align)


def _vmem_budget_bytes():
    """(tile-footprint budget, scoped vmem limit) chosen per chip generation."""
    cap = 64 << 20
    try:
        info = pltpu.get_tpu_info()
        cap = getattr(info, "vmem_capacity_bytes", cap) or cap
    except Exception:
        pass
    if cap >= (100 << 20):              # v5e / v6e: 128 MiB physical VMEM
        return 64 << 20, 96 << 20
    return 24 << 20, 40 << 20           # v7x-class: 64 MiB per TensorCore


def _choose_tiles(tb_max, out_dim, in_dim, x_bytes, w_bytes, out_bytes,
                  tn_max, tk_max, budget_bytes):
    """Pick (TB, TN, TK) respecting (8,128) alignment and a double-buffered VMEM budget."""
    tb = _round_up(max(tb_max, 8), 8)
    tn = _balanced_tile(out_dim, max(tn_max, 128), 128)
    K = _round_up(in_dim, 128)
    tk = min(K, _round_up(max(tk_max, 128), 128))

    def fp(tb_, tn_, tk_):
        # 2x for Pallas double-buffered x / w / out tiles + f32 acc + ssq scratch.
        return (2 * (tb_ * tk_ * x_bytes + tn_ * tk_ * w_bytes + tb_ * tn_ * out_bytes)
                + tb_ * tn_ * 4 + tb_ * 4)

    # Shrink the K tile first (keeps the weight-intensity knobs TB/TN large),
    # then TN, then TB.
    while fp(tb, tn, tk) > budget_bytes and tk > 128:
        tk = _round_up(tk // 2, 128)
    while fp(tb, tn, tk) > budget_bytes and tn > 128:
        tn = _round_up(tn // 2, 128)
    while fp(tb, tn, tk) > budget_bytes and tb > 8:
        tb = _round_up(tb // 2, 8)
    return tb, tn, tk


def _linear_head_kernel(x_ref, w_ref, o_ref, acc_ref, ssq_ref):
    j = pl.program_id(1)          # out_dim tile
    k = pl.program_id(2)          # in_dim (reduction) tile
    nk = pl.num_programs(2)

    @pl.when(k == 0)
    def _zero_acc():
        acc_ref[...] = jnp.zeros_like(acc_ref)

    x = x_ref[...]                                      # (TB, TK), input dtype

    # Row sum-of-squares: computed only on the first out_dim pass (j == 0) for
    # each batch tile, accumulated over K tiles, reused for all other j.
    @pl.when(jnp.logical_and(j == 0, k == 0))
    def _zero_ssq():
        ssq_ref[...] = jnp.zeros_like(ssq_ref)

    @pl.when(j == 0)
    def _accum_ssq():
        xf = x.astype(jnp.float32)
        ssq_ref[...] += jnp.sum(xf * xf, axis=-1, keepdims=True)

    # Raw (un-normalized) x straight into the MXU: (TB,TK) @ (TK,TN) -> f32 acc.
    acc_ref[...] += jnp.dot(x, w_ref[...], preferred_element_type=jnp.float32)

    @pl.when(k == nk - 1)
    def _finalize():
        # F.normalize eps: x / max(||x||,1e-12) == x * rsqrt(max(||x||^2,1e-24));
        # the trailing /0.1 (== *10) is folded into the same per-row scale and
        # applied to the f32 accumulator.
        scale = 10.0 * lax.rsqrt(jnp.maximum(ssq_ref[...], 1e-24))
        o_ref[...] = (acc_ref[...] * scale).astype(o_ref.dtype)


@functools.partial(jax.jit,
                   static_argnames=("tb", "tn", "tk", "out_dim", "vmem_limit"))
def _linear_head_call(x, w_t, *, tb, tn, tk, out_dim, vmem_limit):
    """x: (B, in_dim); w_t: padded, pre-transposed weight (Kp, Np)."""
    B, in_dim = x.shape
    Kp, Np = w_t.shape
    Mp = _round_up(B, tb)
    x_p = x if (Mp == B and Kp == in_dim) else jnp.pad(
        x, ((0, Mp - B), (0, Kp - in_dim)))

    grid = (Mp // tb, Np // tn, Kp // tk)
    out_p = pl.pallas_call(
        _linear_head_kernel,
        out_shape=jax.ShapeDtypeStruct((Mp, Np), x.dtype),
        grid_spec=pltpu.PrefetchScalarGridSpec(
            num_scalar_prefetch=0,
            grid=grid,
            in_specs=[
                pl.BlockSpec((tb, tk), lambda i, j, k: (i, k)),   # x tile
                pl.BlockSpec((tk, tn), lambda i, j, k: (k, j)),   # W.T tile
            ],
            out_specs=pl.BlockSpec((tb, tn), lambda i, j, k: (i, j)),
            scratch_shapes=[
                pltpu.VMEM((tb, tn), jnp.float32),   # matmul accumulator
                pltpu.VMEM((tb, 1), jnp.float32),    # per-row sum of squares
            ]),
        compiler_params=pltpu.CompilerParams(
            # j carries the ssq scratch dependence (computed at j==0, reused for
            # j>0) and k is a reduction -> both "arbitrary"; batch axis shards
            # across TCs on v7x.
            dimension_semantics=("parallel", "arbitrary", "arbitrary"),
            vmem_limit_bytes=int(vmem_limit)),
    )(x_p, w_t)

    return out_p[:B, :out_dim]


class LinearHeadPallas:
    """Pallas TPU LinearHead: y = normalize(x, dim=-1) @ W.T / 0.1 (no bias)."""

    def __init__(self, weight, *, tb_max=512, tn_max=512, tk_max=4096):
        weight = jnp.asarray(weight)
        self.out_dim, self.in_dim = weight.shape
        budget, self.vmem_limit = _vmem_budget_bytes()

        w_bytes = jnp.dtype(weight.dtype).itemsize
        # Assume worst-case 4-byte activations/outputs for the VMEM footprint.
        self.tb_cap, self.tn, self.tk = _choose_tiles(
            tb_max, self.out_dim, self.in_dim,
            x_bytes=4, w_bytes=w_bytes, out_bytes=4,
            tn_max=tn_max, tk_max=tk_max, budget_bytes=budget)

        Np = _round_up(self.out_dim, self.tn)
        Kp = _round_up(self.in_dim, self.tk)
        # Pad + transpose the weight ONCE at construction (no per-call HBM copy,
        # no per-tile transpose): stored as (Kp, Np), the native MXU orientation.
        w_p = weight
        if Np != self.out_dim or Kp != self.in_dim:
            w_p = jnp.pad(weight, ((0, Np - self.out_dim), (0, Kp - self.in_dim)))
        self.w_t = jnp.transpose(w_p)                    # (Kp, Np)

    def __call__(self, x):
        B, in_dim = x.shape
        assert in_dim == self.in_dim, "x last dim must equal in_dim"
        tb = min(_balanced_tile(B, self.tb_cap, 8), self.tb_cap)
        return _linear_head_call(
            x, self.w_t, tb=tb, tn=self.tn, tk=self.tk,
            out_dim=self.out_dim, vmem_limit=self.vmem_limit)


def linear_head_ref(x, weight):
    xf = x.astype(jnp.float32)
    wf = weight.astype(jnp.float32)
    norm = jnp.sqrt(jnp.sum(xf * xf, axis=-1, keepdims=True))
    xn = xf / jnp.maximum(norm, 1e-12)
    return (xn @ wf.T) / 0.1


# TODO(synk): normalize_prototypes() is a parameter-side utility (not part of the
# forward pass); if needed, normalize the weight rows in plain jnp before
# constructing LinearHeadPallas.

if __name__ == "__main__":
    key = jax.random.PRNGKey(0)
    kx, kw, kx2, kw2 = jax.random.split(key, 4)

    # Test 1: f32, unaligned dims (forces M/K/N padding) + tiny tile caps so the
    # 3-D (i, j, k) grid really has multiple steps and exercises the pl.when
    # init / ssq-hoist / finalize paths.
    B, in_dim, out_dim = 24, 160, 384
    x = jax.random.normal(kx, (B, in_dim), dtype=jnp.float32)
    weight = jax.random.normal(kw, (out_dim, in_dim), dtype=jnp.float32) * 0.02

    head = LinearHeadPallas(weight, tb_max=8, tn_max=128, tk_max=128)
    out = jax.block_until_ready(head(x))
    ref = linear_head_ref(x, weight)
    assert out.shape == (B, out_dim)
    assert jnp.allclose(out, ref, atol=1e-3, rtol=1e-3), "f32 mismatch vs reference"

    # Test 2: bf16 operands on the native bf16 MXU path, default (auto) tiles.
    B2, in2, out2 = 16, 256, 128
    x2 = jax.random.normal(kx2, (B2, in2), dtype=jnp.float32).astype(jnp.bfloat16)
    w2 = (jax.random.normal(kw2, (out2, in2), dtype=jnp.float32) * 0.02).astype(jnp.bfloat16)

    head2 = LinearHeadPallas(w2)
    out2_arr = jax.block_until_ready(head2(x2))
    ref2 = linear_head_ref(x2, w2)
    assert out2_arr.shape == (B2, out2)
    assert jnp.allclose(out2_arr.astype(jnp.float32), ref2, atol=2e-2, rtol=2e-2), \
        "bf16 mismatch vs reference"

    print("KERNEL_OK")
</pallas_src>

<mosaic_0001>
module attributes {stable_mosaic.version = 11 : i64} {
  func.func @_linear_head_kernel(%arg0: i32, %arg1: i32, %arg2: i32, %arg3: memref<8x128xf32, #tpu.memory_space<vmem>>, %arg4: memref<128x128xf32, #tpu.memory_space<vmem>>, %arg5: memref<8x128xf32, #tpu.memory_space<vmem>>, %arg6: memref<8x128xf32, #tpu.memory_space<vmem>>, %arg7: memref<8x1xf32, #tpu.memory_space<vmem>>) attributes {dimension_semantics = [#tpu.dimension_semantics<parallel>, #tpu.dimension_semantics<arbitrary>, #tpu.dimension_semantics<arbitrary>], iteration_bounds = array<i64: 3, 3, 2>, scalar_prefetch = 0 : i64, scratch_operands = 2 : i64, tpu.core_type = #tpu.core_type<tc>, window_params = [{transform_indices = @transform_0, window_bounds = array<i64: 8, 128>}, {transform_indices = @transform_1, window_bounds = array<i64: 128, 128>}, {transform_indices = @transform_2, window_bounds = array<i64: 8, 128>}]} {
    %c0_i32 = arith.constant 0 : i32
    %0 = arith.cmpi eq, %arg2, %c0_i32 : i32
    %1 = arith.extui %0 : i1 to i32
    %c0_i32_0 = arith.constant 0 : i32
    %2 = arith.cmpi ne, %1, %c0_i32_0 : i32
    scf.if %2 {
      %cst_14 = arith.constant 0.000000e+00 : f32
      %20 = vector.broadcast %cst_14 : f32 to vector<8x128xf32>
      %c0_15 = arith.constant 0 : index
      %c0_16 = arith.constant 0 : index
      %21 = vector.load %arg6[%c0_15, %c0_16] : memref<8x128xf32, #tpu.memory_space<vmem>>, vector<8x128xf32>
      tpu.vector_store %arg6[%c0_15, %c0_16], %20 {strides = array<i32>} : memref<8x128xf32, #tpu.memory_space<vmem>>, vector<8x128xf32>,
    } else {
    }
    %c0 = arith.constant 0 : index
    %c0_1 = arith.constant 0 : index
    %3 = vector.load %arg3[%c0, %c0_1] : memref<8x128xf32, #tpu.memory_space<vmem>>, vector<8x128xf32>
    %c0_i32_2 = arith.constant 0 : i32
    %4 = arith.cmpi eq, %arg1, %c0_i32_2 : i32
    %c0_i32_3 = arith.constant 0 : i32
    %5 = arith.cmpi eq, %arg2, %c0_i32_3 : i32
    %6 = arith.andi %4, %5 : i1
    %7 = arith.extui %6 : i1 to i32
    %c0_i32_4 = arith.constant 0 : i32
    %8 = arith.cmpi ne, %7, %c0_i32_4 : i32
    scf.if %8 {
      %cst_14 = arith.constant 0.000000e+00 : f32
      %20 = vector.broadcast %cst_14 : f32 to vector<8x1xf32>
      %c0_15 = arith.constant 0 : index
      %c0_16 = arith.constant 0 : index
      %21 = vector.load %arg7[%c0_15, %c0_16] : memref<8x1xf32, #tpu.memory_space<vmem>>, vector<8x1xf32>
      tpu.vector_store %arg7[%c0_15, %c0_16], %20 {strides = array<i32>} : memref<8x1xf32, #tpu.memory_space<vmem>>, vector<8x1xf32>,
    } else {
    }
    %c0_i32_5 = arith.constant 0 : i32
    %9 = arith.cmpi eq, %arg1, %c0_i32_5 : i32
    %10 = arith.extui %9 : i1 to i32
    %c0_i32_6 = arith.constant 0 : i32
    %11 = arith.cmpi ne, %10, %c0_i32_6 : i32
    scf.if %11 {
      %c0_14 = arith.constant 0 : index
      %c0_15 = arith.constant 0 : index
      %20 = vector.load %arg7[%c0_14, %c0_15] : memref<8x1xf32, #tpu.memory_space<vmem>>, vector<8x1xf32>
      %21 = arith.mulf %3, %3 : vector<8x128xf32>
      %cst_16 = arith.constant dense<0.000000e+00> : vector<8xf32>
      %22 = vector.multi_reduction <add>, %21, %cst_16 [1] : vector<8x128xf32> to vector<8xf32>
      %23 = vector.shape_cast %22 : vector<8xf32> to vector<8x1xf32>
      %24 = arith.addf %20, %23 : vector<8x1xf32>
      %c0_17 = arith.constant 0 : index
      %c0_18 = arith.constant 0 : index
      %25 = vector.load %arg7[%c0_17, %c0_18] : memref<8x1xf32, #tpu.memory_space<vmem>>, vector<8x1xf32>
      tpu.vector_store %arg7[%c0_17, %c0_18], %24 {strides = array<i32>} : memref<8x1xf32, #tpu.memory_space<vmem>>, vector<8x1xf32>,
    } else {
    }
    %c0_7 = arith.constant 0 : index
    %c0_8 = arith.constant 0 : index
    %12 = vector.load %arg6[%c0_7, %c0_8] : memref<8x128xf32, #tpu.memory_space<vmem>>, vector<8x128xf32>
    %c0_9 = arith.constant 0 : index
    %c0_10 = arith.constant 0 : index
    %13 = vector.load %arg4[%c0_9, %c0_10] : memref<128x128xf32, #tpu.memory_space<vmem>>, vector<128x128xf32>
    %cst = arith.constant dense<0.000000e+00> : vector<8x128xf32>
    %14 = tpu.matmul %3, %13, %cst {dimension_numbers = #tpu.dot_dimension_numbers<[1], [0], [0], [1], [0, 0, 1, 1], [], []>} : vector<8x128xf32>, vector<128x128xf32>, vector<8x128xf32> -> vector<8x128xf32>
    %15 = arith.addf %12, %14 : vector<8x128xf32>
    %c0_11 = arith.constant 0 : index
    %c0_12 = arith.constant 0 : index
    %16 = vector.load %arg6[%c0_11, %c0_12] : memref<8x128xf32, #tpu.memory_space<vmem>>, vector<8x128xf32>
    tpu.vector_store %arg6[%c0_11, %c0_12], %15 {strides = array<i32>} : memref<8x128xf32, #tpu.memory_space<vmem>>, vector<8x128xf32>,
    %c1_i32 = arith.constant 1 : i32
    %17 = arith.cmpi eq, %arg2, %c1_i32 : i32
    %18 = arith.extui %17 : i1 to i32
    %c0_i32_13 = arith.constant 0 : i32
    %19 = arith.cmpi ne, %18, %c0_i32_13 : i32
    scf.if %19 {
      %c0_14 = arith.constant 0 : index
      %c0_15 = arith.constant 0 : index
      %20 = vector.load %arg7[%c0_14, %c0_15] : memref<8x1xf32, #tpu.memory_space<vmem>>, vector<8x1xf32>
      %cst_16 = arith.constant 1.000000e-24 : f32
      %21 = vector.broadcast %cst_16 : f32 to vector<8x1xf32>
      %22 = arith.maximumf %20, %21 : vector<8x1xf32>
      %23 = math.rsqrt %22 : vector<8x1xf32>
      %cst_17 = arith.constant 1.000000e+01 : f32
      %24 = vector.broadcast %cst_17 : f32 to vector<8x1xf32>
      %25 = arith.mulf %24, %23 : vector<8x1xf32>
      %c0_18 = arith.constant 0 : index
      %c0_19 = arith.constant 0 : index
      %26 = vector.load %arg6[%c0_18, %c0_19] : memref<8x128xf32, #tpu.memory_space<vmem>>, vector<8x128xf32>
      %27 = vector.broadcast %25 : vector<8x1xf32> to vector<8x128xf32>
      %28 = arith.mulf %26, %27 : vector<8x128xf32>
      %c0_20 = arith.constant 0 : index
      %c0_21 = arith.constant 0 : index
      %29 = vector.load %arg5[%c0_20, %c0_21] : memref<8x128xf32, #tpu.memory_space<vmem>>, vector<8x128xf32>
      tpu.vector_store %arg5[%c0_20, %c0_21], %28 {strides = array<i32>} : memref<8x128xf32, #tpu.memory_space<vmem>>, vector<8x128xf32>,
    } else {
    }
    return
  }
  func.func @transform_0(%arg0: i32, %arg1: i32, %arg2: i32) -> (i32, i32) {
    %c0_i32 = arith.constant 0 : i32
    return %arg0, %arg2 : i32, i32
  }
  func.func @transform_1(%arg0: i32, %arg1: i32, %arg2: i32) -> (i32, i32) {
    %c0_i32 = arith.constant 0 : i32
    return %arg2, %arg1 : i32, i32
  }
  func.func @transform_2(%arg0: i32, %arg1: i32, %arg2: i32) -> (i32, i32) {
    %c0_i32 = arith.constant 0 : i32
    return %arg0, %arg1 : i32, i32
  }
}

</mosaic_0001>

<llo_original>
// kernel: _linear_head_call.1
$region0: #{_linear_head_call.1}
  #allocation0 [shape = 'u32[]', space=smem, size = 0x4, offset = 0x4, fixed_abs, tag = 'smem constant byte address 0x4 - core index']
  #allocation1 [shape = 'u32[144,128]{1,0:T(1,128)}', space=vmem, size = 0x12000, scoped, tag = 'internal scratch']
  #allocation2 [shape = 'f32[8,128]{1,0:T(8,128)}', space=vmem, size = 0x1000, scoped, tag = 'scratch operand']
  #allocation3 [shape = 'f32[8,1]{1,0:T(8,128)}', space=vmem, size = 0x1000, scoped, tag = 'scratch operand']
  %s0 = inlined_call_operand.vmem [shape: f32[24,256], index: 0, kind: input, shape index: {}]
  %s1 = inlined_call_operand.hbm [shape: f32[256,384], index: 1, kind: input, shape index: {}]
  %s2 = inlined_call_operand.hbm [shape: f32[24,384], index: 2, kind: output, shape index: {}]
  %s3 = sld [smem:[#allocation0]]
  $region61: #{_linear_head_call.1} parent=0
    _
  %s5 = ssub.s32 1, %s3
  %s6 = scalar_select 0, %s5, %s3
  $region1: #{_linear_head_call.1} parent=0
    #allocation4 [shape = 'u8[131072]{0}', space=vmem, size = 0x20000, scoped, tag = 'input window, operand 1']
    #allocation5 [shape = 's32[2]{0}', space=sflag, size = 0x8, scoped, tag = 'scoped memory for _linear_head_call.1']
    #allocation6 [shape = 's32[2]{0}', space=sflag, size = 0x8, scoped, tag = 'scoped memory for _linear_head_call.1']
    #allocation7 [shape = 'u8[8192]{0}', space=vmem, size = 0x2000, scoped, tag = 'output window, operand 0']
    %7 = vsyncpa [#allocation5], 0
    %s8 = scalar_lea.sflag [#allocation5], 1
    %9 = vsyncpa %s8, 0
    %10 = vsyncpa [#allocation6], 0
    %s11 = scalar_lea.sflag [#allocation6], 1
    %12 = vsyncpa %s11, 0
    loop: start=0, step=1, limit=20
    $region2: #{_linear_head_call.1} parent=1 // loop_pre_header
      _
    $region3: #{_linear_head_call.1} parent=1 // loop_header
      %s14 = sphi 0, %s18
      %p15 = scmp.ge.s32.totalorder %s14, 20
      %s21 = sphi 0, %s40
      %s22 = sphi 0, %s36
      %s23 = sphi 0, %s32
      %s24 = sphi 0, %s21
      %s25 = sphi 0, %s22
      %s26 = sphi 0, %s23
      %s27 = sphi 0, %s24
      %s28 = sphi 0, %s25
      %s29 = sphi 0, %s26
      %s45 = sphi 0, %s47
      %s48 = sphi 0, %s45
      %s49 = sphi 0, %s48
      %s65 = sphi 0, %s49
      %s73 = sphi 0, %s75
      %s76 = sphi 0, %s73
      %s77 = sphi 0, %s76
      %s93 = sphi 0, %s77
      %s101 = sphi 0, %s103
      %s104 = sphi 0, %s101
      %s105 = sphi 0, %s104
      %s121 = sphi 0, %s105
    $region4: #{_linear_head_call.1} parent=1 // loop_header_branch
      %17 = sbr.rel (%p15) target = $region8
    $region5: #{_linear_head_call.1} parent=1 // loop_body
      %s19 = ssub.s32 %s14, 1
      %s20 = ssub.s32 %s14, 2
      %s30 = sadd.s32 1, %s23
      %p31 = scmp.ge.s32.totalorder %s30, 2
      %s32 = scalar_select %p31, 0, %s30
      %s33 = sadd.s32 1, %s22
      %s34 = scalar_select %p31, %s33, %s22
      %p35 = scmp.ge.s32.totalorder %s34, 3
      %s36 = scalar_select %p35, 0, %s34
      %s37 = sadd.s32 1, %s21
      %s38 = scalar_select %p35, %s37, %s21
      %p39 = scmp.ge.s32.totalorder %s38, 3
      %s40 = scalar_select %p39, 0, %s38
      %s41 = ssub.s32 %s21, %s40
      %s42 = ssub.s32 %s23, %s32
      %s43 = sor.u32 %s41, %s42
      %p44 = scmp.eq.s32.totalorder %s43, 0
      %s46 = sadd.s32 %s45, 1
      %s47 = scalar_select %p44, %s45, %s46
      %p50 = pneg %p44
      %p51 = scmp.eq.s32.totalorder %s14, 17
      %p52 = por %p50, %p51
      %p53 = scmp.ne.s32.totalorder %s45, %s48
      %p54 = scmp.eq.s32.totalorder %s14, 0
      %p55 = por %p53, %p54
      %p56 = scmp.ne.s32.totalorder %s45, %s48
      %p57 = scmp.eq.s32.totalorder %s19, 17
      %p58 = por %p56, %p57
      %p59 = scmp.ne.s32.totalorder %s48, %s49
      %p60 = scmp.eq.s32.totalorder %s19, 0
      %p61 = por %p59, %p60
      %p62 = scmp.ne.s32.totalorder %s48, %s49
      %p63 = scmp.eq.s32.totalorder %s20, 17
      %p64 = por %p62, %p63
      %p66 = scmp.ne.s32.totalorder %s49, %s65
      %p67 = scmp.eq.s32.totalorder %s20, 0
      %p68 = por %p66, %p67
      %s69 = ssub.s32 %s23, %s32
      %s70 = ssub.s32 %s22, %s36
      %s71 = sor.u32 %s69, %s70
      %p72 = scmp.eq.s32.totalorder %s71, 0
      %s74 = sadd.s32 %s73, 1
      %s75 = scalar_select %p72, %s73, %s74
      %p78 = pneg %p72
      %p79 = scmp.eq.s32.totalorder %s14, 17
      %p80 = por %p78, %p79
      %p81 = scmp.ne.s32.totalorder %s73, %s76
      %p82 = scmp.eq.s32.totalorder %s14, 0
      %p83 = por %p81, %p82
      %p84 = scmp.ne.s32.totalorder %s73, %s76
      %p85 = scmp.eq.s32.totalorder %s19, 17
      %p86 = por %p84, %p85
      %p87 = scmp.ne.s32.totalorder %s76, %s77
      %p88 = scmp.eq.s32.totalorder %s19, 0
      %p89 = por %p87, %p88
      %p90 = scmp.ne.s32.totalorder %s76, %s77
      %p91 = scmp.eq.s32.totalorder %s20, 17
      %p92 = por %p90, %p91
      %p94 = scmp.ne.s32.totalorder %s77, %s93
      %p95 = scmp.eq.s32.totalorder %s20, 0
      %p96 = por %p94, %p95
      %s97 = ssub.s32 %s21, %s40
      %s98 = ssub.s32 %s22, %s36
      %s99 = sor.u32 %s97, %s98
      %p100 = scmp.eq.s32.totalorder %s99, 0
      %s102 = sadd.s32 %s101, 1
      %s103 = scalar_select %p100, %s101, %s102
      %p106 = pneg %p100
      %p107 = scmp.eq.s32.totalorder %s14, 17
      %p108 = por %p106, %p107
      %p109 = scmp.ne.s32.totalorder %s101, %s104
      %p110 = scmp.eq.s32.totalorder %s14, 0
      %p111 = por %p109, %p110
      %p112 = scmp.ne.s32.totalorder %s101, %s104
      %p113 = scmp.eq.s32.totalorder %s19, 17
      %p114 = por %p112, %p113
      %p115 = scmp.ne.s32.totalorder %s104, %s105
      %p116 = scmp.eq.s32.totalorder %s19, 0
      %p117 = por %p115, %p116
      %p118 = scmp.ne.s32.totalorder %s104, %s105
      %p119 = scmp.eq.s32.totalorder %s20, 17
      %p120 = por %p118, %p119
      %p122 = scmp.ne.s32.totalorder %s105, %s121
      %p123 = scmp.eq.s32.totalorder %s20, 0
      %p124 = por %p122, %p123
      %p125 = scmp.le.s32.totalorder 1, %s14
      %p126 = scmp.lt.s32.totalorder %s14, 19
      %p127 = pnand %p125, %p126
      %p128 = pneg %p127
      // Predicated region
      $region9: #{_linear_head_call.1} parent=5 // pred_check
        _
      $region10: #{_linear_head_call.1} parent=5 // pred_check_branch
        %130 = sbr.rel (%p127) target = $region12
      $region11: #{_linear_head_call.1} parent=5 // pred_region
        %s131 = ssub.s32 %s14, 1
      $region12: #{_linear_head_call.1} parent=5 // pred_fallthru
        _
      %p132 = scmp.lt.s32.totalorder %s14, 18
      // Predicated region
      $region13: #{_linear_head_call.1} parent=5 // pred_check
        %p133 = pneg %p132
      $region14: #{_linear_head_call.1} parent=5 // pred_check_branch
        %135 = sbr.rel (%p133) target = $region16
      $region15: #{_linear_head_call.1} parent=5 // pred_region
        // Predicated region
        $region17: #{_linear_head_call.1} parent=15 // pred_check
          %p136 = pneg %p55
        $region18: #{_linear_head_call.1} parent=15 // pred_check_branch
          %138 = sbr.rel (%p136) target = $region20
        $region19: #{_linear_head_call.1} parent=15 // pred_region
          %p139 = scmp.lt.s32.totalorder %s21, 2
          %s140 = scalar_select %p139, %s21, 2
          %p141 = scmp.lt.s32.totalorder %s23, 1
          %s142 = scalar_select %p141, %s23, 1
          %s143 = smul.addr %s140, 2
          %s144 = sadd.s32 %s142, %s143
          %s145 = smul.addr %s144, 8
          %s146 = scalar_lea.vmem %s0, %s145
        $region20: #{_linear_head_call.1} parent=15 // pred_fallthru
          _
        // Predicated region
        $region21: #{_linear_head_call.1} parent=15 // pred_check
          %p147 = pneg %p83
        $region22: #{_linear_head_call.1} parent=15 // pred_check_branch
          %149 = sbr.rel (%p147) target = $region24
        $region23: #{_linear_head_call.1} parent=15 // pred_region
          %s150 = sand.u32 %s73, 1
          %s151 = scalar_lea.sflag [#allocation5], %s150
          %s152 = sand.u32 %s73, 1
          %s153 = smul.addr %s152, 128
          %s154 = scalar_lea.vmem [#allocation4], %s153
          %s155 = smul.u32 16, %s23
          %s157 = ssub.s32 2048, 2048
          %158 = vsyncadd %s151, %s157
          %s159 = smul.addr %s155, 3
          %s160 = sadd.s32 %s22, %s159
          %s161 = smul.addr %s160, 128
          %s162 = scalar_lea.hbm %s1, %s161
          %s163 = sshll.u32 %s154, 4
          %s164 = int_to_ptr.vmem [resolvable:$true] %s163
          %169 = dma.hbm_to_vmem [thread:$0]  %s162, 2048, %s164, %s151, 384, 128, 8
        $region24: #{_linear_head_call.1} parent=15 // pred_fallthru
          _
      $region16: #{_linear_head_call.1} parent=5 // pred_fallthru
        _
      %p170 = scmp.le.s32.totalorder 1, %s14
      %p171 = scmp.lt.s32.totalorder %s14, 19
      %p172 = pnand %p170, %p171
      %p173 = pneg %p172
      // Predicated region
      $region25: #{_linear_head_call.1} parent=5 // pred_check
        _
      $region26: #{_linear_head_call.1} parent=5 // pred_check_branch
        %175 = sbr.rel (%p172) target = $region28
      $region27: #{_linear_head_call.1} parent=5 // pred_region
        %s176 = ssub.s32 %s14, 1
        %s177 = sand.u32 %s76, 1
        %s178 = scalar_lea.sflag [#allocation5], %s177
        %s179 = sand.u32 %s76, 1
        %s180 = smul.addr %s179, 128
        %s181 = scalar_lea.vmem [#allocation4], %s180
        // Predicated region
        $region29: #{_linear_head_call.1} parent=27 // pred_check
          %p182 = pneg %p89
        $region30: #{_linear_head_call.1} parent=27 // pred_check_branch
          %184 = sbr.rel (%p182) target = $region32
        $region31: #{_linear_head_call.1} parent=27 // pred_region
          %185 = dma.done %s178, 2048
        $region32: #{_linear_head_call.1} parent=27 // pred_fallthru
          _
        %p186 = scmp.lt.s32.totalorder %s24, 2
        %s187 = scalar_select %p186, %s24, 2
        %p188 = scmp.lt.s32.totalorder %s26, 1
        %s189 = scalar_select %p188, %s26, 1
        %s190 = smul.addr %s187, 2
        %s191 = sadd.s32 %s189, %s190
        %s192 = smul.addr %s191, 8
        %s193 = scalar_lea.vmem %s0, %s192
        %p194 = pneg %p61
        %p195 = pneg %p58
        %s196 = sand.u32 %s76, 1
        %s197 = scalar_lea.sflag [#allocation5], %s196
        %s198 = sand.u32 %s76, 1
        %s199 = smul.addr %s198, 128
        %s200 = scalar_lea.vmem [#allocation4], %s199
        %p201 = pneg %p89
        %p202 = pneg %p86
        %p203 = pneg %p117
        %p204 = pneg %p114
        %s205 = sand.u32 %s104, 1
        %s206 = scalar_lea.sflag [#allocation6], %s205
        %s207 = sand.u32 %s104, 1
        %s208 = smul.addr %s207, 8
        %s209 = scalar_lea.vmem [#allocation7], %s208
        %p210 = scmp.lt.s32.totalorder %s24, 2
        %s211 = scalar_select %p210, %s24, 2
        %p212 = scmp.lt.s32.totalorder %s26, 1
        %s213 = scalar_select %p212, %s26, 1
        %s214 = smul.addr %s211, 2
        %s215 = sadd.s32 %s213, %s214
        %s216 = smul.addr %s215, 8
        %s217 = scalar_lea.vmem %s0, %s216
        %s218 = smul.u32 16, %s26
        %p219 = scmp.eq.s32.totalorder %s26, 0
        // Predicated region
        $region33: #{_linear_head_call.1} parent=27 // pred_check
          %p220 = pneg %p219
        $region34: #{_linear_head_call.1} parent=27 // pred_check_branch
          %222 = sbr.rel (%p220) target = $region36
        $region35: #{_linear_head_call.1} parent=27 // pred_region
          %223 = vst [vmem:[#allocation2] sm:$0xff] 0.0
        $region36: #{_linear_head_call.1} parent=27 // pred_fallthru
          _
        %v224 = vld [vmem:[%s217] sm:$0xff]
        %p225 = scmp.eq.s32.totalorder %s25, 0
        %p226 = pnand %p225, %p219
        %p227 = pneg %p226
        // Predicated region
        $region37: #{_linear_head_call.1} parent=27 // pred_check
          _
        $region38: #{_linear_head_call.1} parent=27 // pred_check_branch
          %229 = sbr.rel (%p226) target = $region40
        $region39: #{_linear_head_call.1} parent=27 // pred_region
          %vm230 = vcmask 7168
          %231 = vst.msk [vmem:[#allocation3] sm:$0xff] %vm230, 0.0
        $region40: #{_linear_head_call.1} parent=27 // pred_fallthru
          _
        // Predicated region
        $region41: #{_linear_head_call.1} parent=27 // pred_check
          %p232 = pneg %p225
        $region42: #{_linear_head_call.1} parent=27 // pred_check_branch
          %234 = sbr.rel (%p232) target = $region44
        $region43: #{_linear_head_call.1} parent=27 // pred_region
          %v235 = vld [vmem:[#allocation3] sm:$0xff]
          %v236 = vmul.f32 %v224, %v224
          %237 = vadd.xlane.f32.xlu0 %v236
          %v238 = vpop.xlane.xlu0 %237
          %v239 = vadd.f32 %v235, %v238
          %vm240 = vcmask 7168
          %241 = vst.msk [vmem:[#allocation3] sm:$0xff] %vm240, %v239
        $region44: #{_linear_head_call.1} parent=27 // pred_fallthru
          _
        %v242 = vld [vmem:[#allocation2] sm:$0xff]
        %v243 = vld [vmem:[%s181] sm:$0xff]
        %v244 = vld [vmem:[%s181 + $0x8] sm:$0xff]
        %v245 = vld [vmem:[%s181 + $0x10] sm:$0xff]
        %v246 = vld [vmem:[%s181 + $0x18] sm:$0xff]
        %v247 = vld [vmem:[%s181 + $0x20] sm:$0xff]
        %v248 = vld [vmem:[%s181 + $0x28] sm:$0xff]
        %v249 = vld [vmem:[%s181 + $0x30] sm:$0xff]
        %v250 = vld [vmem:[%s181 + $0x38] sm:$0xff]
        %v251 = vld [vmem:[%s181 + $0x40] sm:$0xff]
        %v252 = vld [vmem:[%s181 + $0x48] sm:$0xff]
        %v253 = vld [vmem:[%s181 + $0x50] sm:$0xff]
        %v254 = vld [vmem:[%s181 + $0x58] sm:$0xff]
        %v255 = vld [vmem:[%s181 + $0x60] sm:$0xff]
        %v256 = vld [vmem:[%s181 + $0x68] sm:$0xff]
        %v257 = vld [vmem:[%s181 + $0x70] sm:$0xff]
        %v258 = vld [vmem:[%s181 + $0x78] sm:$0xff]
        %259 = vmatprep.subr.mxu0 0.0
        %260 = vmatpush1.msra.mxu0 %v258
        %261 = vmatprep.subr.mxu0 0.0
        %262 = vmatpush1.msra.mxu0 %v257
        %263 = vmatprep.subr.mxu0 0.0
        %264 = vmatpush1.msra.mxu0 %v256
        %265 = vmatprep.subr.mxu0 0.0
        %266 = vmatpush1.msra.mxu0 %v255
        %267 = vmatprep.subr.mxu0 0.0
        %268 = vmatpush1.msra.mxu0 %v254
        %269 = vmatprep.subr.mxu0 0.0
        %270 = vmatpush1.msra.mxu0 %v253
        %271 = vmatprep.subr.mxu0 0.0
        %272 = vmatpush1.msra.mxu0 %v252
        %273 = vmatprep.subr.mxu0 0.0
        %274 = vmatpush1.msra.mxu0 %v251
        %275 = vmatprep.subr.mxu0 0.0
        %276 = vmatpush1.msra.mxu0 %v250
        %277 = vmatprep.subr.mxu0 0.0
        %278 = vmatpush1.msra.mxu0 %v249
        %279 = vmatprep.subr.mxu0 0.0
        %280 = vmatpush1.msra.mxu0 %v248
        %281 = vmatprep.subr.mxu0 0.0
        %282 = vmatpush1.msra.mxu0 %v247
        %283 = vmatprep.subr.mxu0 0.0
        %284 = vmatpush1.msra.mxu0 %v246
        %285 = vmatprep.subr.mxu0 0.0
        %286 = vmatpush1.msra.mxu0 %v245
        %287 = vmatprep.subr.mxu0 0.0
        %288 = vmatpush1.msra.mxu0 %v244
        %289 = vmatprep.subr.mxu0 0.0
        %290 = vmatpush1.msra.mxu0 %v243
        %291 = vmatprep.subr.mxu0 0.0
        %292 = vmatpush2.msra.mxu0 0.0
        %293 = vmatprep.subr.mxu0 0.0
        %294 = vmatpush2.msra.mxu0 0.0
        %295 = vmatprep.subr.mxu0 0.0
        %296 = vmatpush2.msra.mxu0 0.0
        %297 = vmatprep.subr.mxu0 0.0
        %298 = vmatpush2.msra.mxu0 0.0
        %299 = vmatprep.subr.mxu0 0.0
        %300 = vmatpush2.msra.mxu0 0.0
        %301 = vmatprep.subr.mxu0 0.0
        %302 = vmatpush2.msra.mxu0 0.0
        %303 = vmatprep.subr.mxu0 0.0
        %304 = vmatpush2.msra.mxu0 0.0
        %305 = vmatprep.subr.mxu0 0.0
        %306 = vmatpush2.msra.mxu0 0.0
        %307 = vmatprep.subr.mxu0 0.0
        %308 = vmatpush2.msra.mxu0 0.0
        %309 = vmatprep.subr.mxu0 0.0
        %310 = vmatpush2.msra.mxu0 0.0
        %311 = vmatprep.subr.mxu0 0.0
        %312 = vmatpush2.msra.mxu0 0.0
        %313 = vmatprep.subr.mxu0 0.0
        %314 = vmatpush2.msra.mxu0 0.0
        %315 = vmatprep.subr.mxu0 0.0
        %316 = vmatpush2.msra.mxu0 0.0
        %317 = vmatprep.subr.mxu0 0.0
        %318 = vmatpush2.msra.mxu0 0.0
        %319 = vmatprep.subr.mxu0 0.0
        %320 = vmatpush2.msra.mxu0 0.0
        %321 = vmatprep.subr.mxu0 0.0
        %322 = vmatpush2.msra.mxu0 0.0
        %323 = vmatprep.mubr.f32.mxu0 0.0
        %324 = vmatmul.mubr.f32.gmra.mxu0 %v224
        %v325 = vpop.f32.mrf.mxu0
        %v326 = vadd.f32 0.0, %v325
        %v327 = vpop.f32.mrf.mxu0
        %328 = vdwg.mxu0
        %v329 = vadd.f32 %v242, %v326
        %330 = vst [vmem:[#allocation2] sm:$0xff] %v329
        %p331 = scmp.eq.s32.totalorder %s26, 1
        // Predicated region
        $region45: #{_linear_head_call.1} parent=27 // pred_check
          %p332 = pneg %p331
        $region46: #{_linear_head_call.1} parent=27 // pred_check_branch
          %334 = sbr.rel (%p332) target = $region48
        $region47: #{_linear_head_call.1} parent=27 // pred_region
          %v335 = vld [vmem:[#allocation3] sm:$0xff]
          %v336 = vmax.f32 %v335, 1e-24
          %v337 = vrsqrt.pop %v336
          %v338 = vmul.f32 %v337, 10.0
          %v339 = vld [vmem:[#allocation2] sm:$0xff]
          %341 = vset.pattern.permute.xlu0 0
          %342 = vperm.xlu0 %341, %v338
          %v343 = vpop.permute.xlu0 %342
          %v345 = vmul.f32 %v339, %v343
          %346 = vst [vmem:[%s209] sm:$0xff] %v345
        $region48: #{_linear_head_call.1} parent=27 // pred_fallthru
          _
        %s347 = sand.u32 %s104, 1
        %s348 = scalar_lea.sflag [#allocation6], %s347
        %s349 = sand.u32 %s104, 1
        %s350 = smul.addr %s349, 8
        %s351 = scalar_lea.vmem [#allocation7], %s350
        // Predicated region
        $region49: #{_linear_head_call.1} parent=27 // pred_check
          %p352 = pneg %p114
        $region50: #{_linear_head_call.1} parent=27 // pred_check_branch
          %354 = sbr.rel (%p352) target = $region52
        $region51: #{_linear_head_call.1} parent=27 // pred_region
          %s356 = ssub.s32 128, 128
          %357 = vsyncadd %s348, %s356
          %s358 = smul.addr %s24, 3
          %s359 = sadd.s32 %s25, %s358
          %s360 = smul.addr %s359, 128
          %s361 = scalar_lea.hbm %s2, %s360
          %s363 = sshll.u32 %s351, 4
          %s364 = int_to_ptr.vmem [resolvable:$true] %s363
          %366 = dma.vmem_to_hbm [thread:$0]  %s364, 128, %s361, %s348
        $region52: #{_linear_head_call.1} parent=27 // pred_fallthru
          _
      $region28: #{_linear_head_call.1} parent=5 // pred_fallthru
        _
      %p367 = scmp.le.s32.totalorder 2, %s14
      // Predicated region
      $region53: #{_linear_head_call.1} parent=5 // pred_check
        %p368 = pneg %p367
      $region54: #{_linear_head_call.1} parent=5 // pred_check_branch
        %370 = sbr.rel (%p368) target = $region56
      $region55: #{_linear_head_call.1} parent=5 // pred_region
        %s371 = ssub.s32 %s14, 2
        // Predicated region
        $region57: #{_linear_head_call.1} parent=55 // pred_check
          %p372 = pneg %p120
        $region58: #{_linear_head_call.1} parent=55 // pred_check_branch
          %374 = sbr.rel (%p372) target = $region60
        $region59: #{_linear_head_call.1} parent=55 // pred_region
          %s375 = sand.u32 %s105, 1
          %s376 = scalar_lea.sflag [#allocation6], %s375
          %s377 = sand.u32 %s105, 1
          %s378 = smul.addr %s377, 8
          %s379 = scalar_lea.vmem [#allocation7], %s378
          %380 = dma.done %s376, 128
        $region60: #{_linear_head_call.1} parent=55 // pred_fallthru
          _
      $region56: #{_linear_head_call.1} parent=5 // pred_fallthru
        _
    $region6: #{_linear_head_call.1} parent=1 // loop_footer
      %s18 = sadd.s32 1, %s14
    $region7: #{_linear_head_call.1} parent=1 // loop_footer_branch
      %13 = sbr.rel target = $region3
    $region8: #{_linear_head_call.1} parent=1 // loop_exit
      _
    %381 = vsyncpa [#allocation5], 1
    %s382 = scalar_lea.sflag [#allocation5], 1
    %383 = vsyncpa %s382, 1
    %384 = vsyncpa [#allocation6], 1
    %s385 = scalar_lea.sflag [#allocation6], 1
    %386 = vsyncpa %s385, 1

</llo_original>
